<compile_context>
chip_gen: v5e
topology: v5e:2x2
jax: 0.10.0
libtpu: 0.0.40
codegen_flags: <defaults>
</compile_context>

<pallas_src>
from functools import partial

import jax
import jax.numpy as jnp
from jax.experimental import pallas as pl
from jax.experimental.pallas import tpu as pltpu

FACONV_EPS = 0.1            # torch_geometric FAConv default eps
LANE = 128                  # lane-dense padding target
VMEM_LIMIT = 32 * 1024 * 1024


def _round_up(a, b):
    return ((a + b - 1) // b) * b


def _pick_tiles(n):
    """Pick (tm, tk, n_pad): tk is a multiple of tm, both divide n_pad.

    Node padding is capped at ~12.5% of the 128-rounded node count (so the O(N^2)
    adjacency work never silently multiplies); within that budget we take the
    largest tiles (up to tm=512, tk=2048) to maximize HBM-roofline fraction.
    """
    n128 = _round_up(max(n, 1), LANE)
    tm, tk = LANE, LANE
    for cand_tm, cand_tk in ((128, 128), (128, 256), (256, 256), (256, 512),
                             (256, 1024), (512, 1024), (512, 2048)):
        if _round_up(n, cand_tk) - n128 <= n128 // 8:
            tm, tk = cand_tm, cand_tk
    n_pad = _round_up(n, tk)
    # Keep >= 2 row tiles when possible so the row axis can shard across v7x's 2 TCs.
    if n_pad // tm < 2 and tm > LANE:
        tm //= 2
    return tm, tk, n_pad


# ----------------------------------------------------------------------------
# Kernel 1: input projection  h0 = x @ W_in + b_in   (all dims lane-dense padded)
# ----------------------------------------------------------------------------
def _proj_kernel(x_ref, w_ref, b_ref, h0_ref):
    h0_ref[...] = (jnp.dot(x_ref[...], w_ref[...],
                           preferred_element_type=jnp.float32) + b_ref[...])


def _project(x_pad, w_in, b_in, *, tm):
    n_pad, in_p = x_pad.shape
    hp = w_in.shape[1]
    return pl.pallas_call(
        _proj_kernel,
        out_shape=jax.ShapeDtypeStruct((n_pad, hp), jnp.float32),
        grid_spec=pltpu.PrefetchScalarGridSpec(
            num_scalar_prefetch=0,
            grid=(n_pad // tm,),
            in_specs=[
                pl.BlockSpec((tm, in_p), lambda i: (i, 0)),
                pl.BlockSpec((in_p, hp), lambda i: (0, 0)),
                pl.BlockSpec((1, hp), lambda i: (0, 0)),
            ],
            out_specs=pl.BlockSpec((tm, hp), lambda i: (i, 0)),
        ),
        compiler_params=pltpu.CompilerParams(
            dimension_semantics=("parallel",),
            vmem_limit_bytes=VMEM_LIMIT,
        ),
    )(x_pad, w_in, b_in)


# ----------------------------------------------------------------------------
# Kernel 2: per-layer hoisted precompute (O(N*hp), tiny vs O(N^2) aggregation):
#   ar_i = att_r . h_i            -> (n_pad, 1) f32   (destination side)
#   al_j = att_l . h_j            -> (1, n_pad) f32   (stored transposed for (1,tk) tiles)
#   rhs_j = d_j^{-1/2} * h_j      -> (n_pad, hp) bf16 (MXU rhs operand, cast once)
# ----------------------------------------------------------------------------
def _precompute_kernel(h_ref, attl_ref, attr_ref, dinv_ref, ar_ref, alt_ref, rhs_ref):
    h = h_ref[...]
    ar_ref[...] = jax.lax.dot_general(h, attr_ref[...], (((1,), (1,)), ((), ())),
                                      preferred_element_type=jnp.float32)
    alt_ref[...] = jax.lax.dot_general(attl_ref[...], h, (((1,), (1,)), ((), ())),
                                       preferred_element_type=jnp.float32)
    rhs_ref[...] = (dinv_ref[...] * h).astype(jnp.bfloat16)


def _precompute(h, dinv, att_l, att_r, *, tm):
    n_pad, hp = h.shape
    return pl.pallas_call(
        _precompute_kernel,
        out_shape=(
            jax.ShapeDtypeStruct((n_pad, 1), jnp.float32),
            jax.ShapeDtypeStruct((1, n_pad), jnp.float32),
            jax.ShapeDtypeStruct((n_pad, hp), jnp.bfloat16),
        ),
        grid_spec=pltpu.PrefetchScalarGridSpec(
            num_scalar_prefetch=0,
            grid=(n_pad // tm,),
            in_specs=[
                pl.BlockSpec((tm, hp), lambda i: (i, 0)),
                pl.BlockSpec((1, hp), lambda i: (0, 0)),
                pl.BlockSpec((1, hp), lambda i: (0, 0)),
                pl.BlockSpec((tm, 1), lambda i: (i, 0)),
            ],
            out_specs=(
                pl.BlockSpec((tm, 1), lambda i: (i, 0)),
                pl.BlockSpec((1, tm), lambda i: (0, i)),
                pl.BlockSpec((tm, hp), lambda i: (i, 0)),
            ),
        ),
        compiler_params=pltpu.CompilerParams(
            dimension_semantics=("parallel",),
            vmem_limit_bytes=VMEM_LIMIT,
        ),
    )(h, att_l, att_r, dinv)


# ----------------------------------------------------------------------------
# Kernel 3: one FAConv layer, (row_tile i, col_tile k) grid over the int8 adjacency.
# Per nonzero tile: alpha = tanh(ar_i + al_j), msg = adj*alpha (bf16), out += msg @ rhs.
# Zero tiles are skipped (compute via pl.when, DMA via fetch-index redirect).
# Epilogue at the last k: out = dinv_i * out + eps*h0 (+ ReLU).
# ----------------------------------------------------------------------------
def _faconv_kernel(mask_ref, fetch_ref, ar_ref, alt_ref, adj_ref, rhs_ref,
                   dinv_ref, h0_ref, out_ref, *, num_k, apply_relu):
    i = pl.program_id(0)
    k = pl.program_id(1)

    @pl.when(k == 0)
    def _():
        out_ref[...] = jnp.zeros_like(out_ref)

    @pl.when(mask_ref[i * num_k + k] != 0)
    def _():
        alpha = jnp.tanh(ar_ref[...] + alt_ref[...])                      # [tm, tk] f32
        msg = (adj_ref[...].astype(jnp.float32) * alpha).astype(jnp.bfloat16)
        out_ref[...] += jnp.dot(msg, rhs_ref[...],
                                preferred_element_type=jnp.float32)       # [tm, hp]

    @pl.when(k == num_k - 1)
    def _():
        out = dinv_ref[...] * out_ref[...] + FACONV_EPS * h0_ref[...]
        if apply_relu:
            out = jnp.maximum(out, 0.0)
        out_ref[...] = out


def _faconv(h, h0, adj_i8, dinv, att_l, att_r, tile_mask, tile_fetch, *,
            tm, tk, apply_relu):
    n_pad, hp = h.shape
    num_i, num_k = n_pad // tm, n_pad // tk

    # Hoisted per-node quantities (removes two dot_generals + a mul/cast from the inner loop).
    ar, al_t, rhs = _precompute(h, dinv, att_l, att_r, tm=tm)

    kernel = partial(_faconv_kernel, num_k=num_k, apply_relu=apply_relu)

    def _f(i, k, fetch):
        # Effective column-tile index: zero tiles reuse the previously fetched index,
        # so the pipeline elides their DMA entirely.
        return fetch[i * num_k + k]

    return pl.pallas_call(
        kernel,
        out_shape=jax.ShapeDtypeStruct((n_pad, hp), jnp.float32),
        grid_spec=pltpu.PrefetchScalarGridSpec(
            num_scalar_prefetch=2,
            grid=(num_i, num_k),
            in_specs=[
                pl.BlockSpec((tm, 1), lambda i, k, m, f: (i, 0)),              # ar_i
                pl.BlockSpec((1, tk), lambda i, k, m, f: (0, _f(i, k, f))),    # al_j^T
                pl.BlockSpec((tm, tk), lambda i, k, m, f: (i, _f(i, k, f))),   # adj int8
                pl.BlockSpec((tk, hp), lambda i, k, m, f: (_f(i, k, f), 0)),   # rhs bf16
                pl.BlockSpec((tm, 1), lambda i, k, m, f: (i, 0)),              # d_i^{-1/2}
                pl.BlockSpec((tm, hp), lambda i, k, m, f: (i, 0)),             # h0 residual
            ],
            out_specs=pl.BlockSpec((tm, hp), lambda i, k, m, f: (i, 0)),
        ),
        compiler_params=pltpu.CompilerParams(
            dimension_semantics=("parallel", "arbitrary"),
            vmem_limit_bytes=VMEM_LIMIT,
        ),
    )(tile_mask, tile_fetch, ar, al_t, adj_i8, rhs, dinv, h0)


# ----------------------------------------------------------------------------
# Kernel 4: classifier head (logits, softmax over real classes, argmax from logits)
# ----------------------------------------------------------------------------
def _head_kernel(h_ref, w_ref, b_ref, logits_ref, soft_ref, hard_ref, *, n_cls):
    logits = (jnp.dot(h_ref[...], w_ref[...],
                      preferred_element_type=jnp.float32) + b_ref[...])
    logits_ref[...] = logits

    cls_idx = jax.lax.broadcasted_iota(jnp.int32, logits.shape, 1)
    masked = jnp.where(cls_idx < n_cls, logits, -jnp.inf)     # hide zero-padded classes

    m = jnp.max(masked, axis=1, keepdims=True)
    e = jnp.exp(masked - m)                                   # padded classes -> exactly 0
    soft_ref[...] = e / jnp.sum(e, axis=1, keepdims=True)

    # argmax straight from logits (softmax is monotone); smallest index wins ties.
    cand = jnp.where(masked >= m, cls_idx, logits.shape[1])
    hard_ref[...] = jnp.min(cand, axis=1, keepdims=True)


def _head(h2, w_cls, b_cls, n_cls, *, tm):
    n_pad, hp = h2.shape
    cp = w_cls.shape[1]
    kernel = partial(_head_kernel, n_cls=n_cls)
    return pl.pallas_call(
        kernel,
        out_shape=(
            jax.ShapeDtypeStruct((n_pad, cp), jnp.float32),
            jax.ShapeDtypeStruct((n_pad, cp), jnp.float32),
            jax.ShapeDtypeStruct((n_pad, 1), jnp.int32),
        ),
        grid_spec=pltpu.PrefetchScalarGridSpec(
            num_scalar_prefetch=0,
            grid=(n_pad // tm,),
            in_specs=[
                pl.BlockSpec((tm, hp), lambda i: (i, 0)),
                pl.BlockSpec((hp, cp), lambda i: (0, 0)),
                pl.BlockSpec((1, cp), lambda i: (0, 0)),
            ],
            out_specs=(
                pl.BlockSpec((tm, cp), lambda i: (i, 0)),
                pl.BlockSpec((tm, cp), lambda i: (i, 0)),
                pl.BlockSpec((tm, 1), lambda i: (i, 0)),
            ),
        ),
        compiler_params=pltpu.CompilerParams(
            dimension_semantics=("parallel",),
            vmem_limit_bytes=VMEM_LIMIT,
        ),
    )(h2, w_cls, b_cls)


# ----------------------------------------------------------------------------
# Parameters & forward wrapper
# ----------------------------------------------------------------------------
def init_params(key, in_feats, hidden, out_feats):
    ks = jax.random.split(key, 6)

    def glorot(k, shape):
        lim = (6.0 / (shape[0] + shape[1])) ** 0.5
        return jax.random.uniform(k, shape, jnp.float32, -lim, lim)

    return dict(
        w_in=glorot(ks[0], (in_feats, hidden)),      # input_proj weight (transposed)
        b_in=jnp.zeros((1, hidden), jnp.float32),
        att_l1=glorot(ks[1], (1, hidden)),           # faconv1.att_l
        att_r1=glorot(ks[2], (hidden, 1)),           # faconv1.att_r
        att_l2=glorot(ks[3], (1, hidden)),
        att_r2=glorot(ks[4], (hidden, 1)),
        w_cls=glorot(ks[5], (hidden, out_feats)),    # classifier weight (transposed)
        b_cls=jnp.zeros((1, out_feats), jnp.float32),
    )


def fagcn_forward(x, edge_index, params):
    N, in_feats = x.shape
    hidden = params["w_in"].shape[1]
    out_feats = params["w_cls"].shape[1]

    hp = _round_up(max(hidden, LANE), LANE)       # lane-dense hidden width
    cp = _round_up(max(out_feats, LANE), LANE)    # lane-dense class width
    in_p = _round_up(max(in_feats, LANE), LANE)   # lane-dense input-feature width
    tm, tk, n_pad = _pick_tiles(N)
    num_i, num_k = n_pad // tm, n_pad // tk

    # ---- zero-pad parameters to lane-dense widths (exactly preserves the math) ----
    w_in = jnp.zeros((in_p, hp), jnp.float32).at[:in_feats, :hidden].set(params["w_in"])
    b_in = jnp.zeros((1, hp), jnp.float32).at[:, :hidden].set(params["b_in"])
    att_l1 = jnp.zeros((1, hp), jnp.float32).at[:, :hidden].set(params["att_l1"])
    att_r1 = jnp.zeros((1, hp), jnp.float32).at[:, :hidden].set(params["att_r1"].T)
    att_l2 = jnp.zeros((1, hp), jnp.float32).at[:, :hidden].set(params["att_l2"])
    att_r2 = jnp.zeros((1, hp), jnp.float32).at[:, :hidden].set(params["att_r2"].T)
    w_cls = jnp.zeros((hp, cp), jnp.float32).at[:hidden, :out_feats].set(params["w_cls"])
    b_cls = jnp.zeros((1, cp), jnp.float32).at[:, :out_feats].set(params["b_cls"])

    # ---- glue: dense adjacency A[i, j] = #edges j -> i, built directly in int8 ----
    src, dst = edge_index[0], edge_index[1]
    nodes = jnp.arange(N, dtype=jnp.int32)
    diag = jnp.arange(n_pad, dtype=jnp.int32)

    adj = jnp.zeros((n_pad, n_pad), jnp.int8).at[dst, src].add(jnp.int8(1))
    # add_remaining_self_loops semantics: only nodes without an existing self-loop get one.
    has_loop = jnp.zeros((n_pad,), jnp.int32).at[dst].add(
        (src == dst).astype(jnp.int32)) > 0
    add_loop = (diag < N) & (~has_loop)
    adj = adj.at[diag, diag].add(add_loop.astype(jnp.int8))

    # gcn_norm degrees (self-loop-augmented in-degree); padded rows -> dinv = 0.
    deg = jnp.zeros((n_pad, 1), jnp.float32).at[dst, 0].add(1.0)
    deg = deg.at[:, 0].add(add_loop.astype(jnp.float32))
    dinv = jnp.where(deg > 0.0, jax.lax.rsqrt(deg), 0.0)

    # ---- per-(row_tile, col_tile) nonzero table: skip DMA + compute of empty tiles ----
    tnz = jnp.zeros((num_i, num_k), jnp.int32)
    tnz = tnz.at[dst // tm, src // tk].add(1)
    tnz = tnz.at[nodes // tm, nodes // tk].add(1)          # diagonal (self-loop) blocks
    mask2d = (tnz > 0).astype(jnp.int32)
    kk = jnp.broadcast_to(jnp.arange(num_k, dtype=jnp.int32), (num_i, num_k))
    fetch2d = jnp.maximum(jax.lax.cummax(jnp.where(mask2d > 0, kk, -1), axis=1), 0)
    tile_mask = mask2d.reshape(-1)
    tile_fetch = fetch2d.reshape(-1)

    x_pad = jnp.zeros((n_pad, in_p), jnp.float32).at[:N, :in_feats].set(
        x.astype(jnp.float32))

    # ---- input projection ----
    h0 = _project(x_pad, w_in, b_in, tm=tm)
    # TODO(synk): F.dropout(p=0.5) is stochastic training-time only; identity in eval mode.

    # ---- two FAConv layers (ReLU fused into layer 1's epilogue) ----
    h1 = _faconv(h0, h0, adj, dinv, att_l1, att_r1, tile_mask, tile_fetch,
                 tm=tm, tk=tk, apply_relu=True)
    h2 = _faconv(h1, h0, adj, dinv, att_l2, att_r2, tile_mask, tile_fetch,
                 tm=tm, tk=tk, apply_relu=False)

    # ---- classifier + softmax + argmax ----
    logits_p, soft_p, hard_p = _head(h2, w_cls, b_cls, out_feats, tm=tm)

    logits = logits_p[:N, :out_feats]
    emb = h2[:N, :hidden]
    soft = soft_p[:N, :out_feats]
    hard = hard_p[:N, 0]
    return logits, {"embedding": emb, "soft_label": soft, "hard_label": hard}


if __name__ == "__main__":
    N, in_feats, hidden, out_feats = 16, 8, 32, 4

    key = jax.random.PRNGKey(0)
    kx, kp = jax.random.split(key, 2)

    x = jax.random.normal(kx, (N, in_feats), jnp.float32)

    # Deterministic bidirectional ring graph, no self-loops: edge_index is [2, 2N].
    fwd = jnp.arange(N, dtype=jnp.int32)
    nxt = (fwd + 1) % N
    edge_index = jnp.stack([jnp.concatenate([fwd, nxt]),
                            jnp.concatenate([nxt, fwd])])

    params = init_params(kp, in_feats, hidden, out_feats)

    logits, aux = fagcn_forward(x, edge_index, params)
    jax.block_until_ready((logits, aux))

    assert logits.shape == (N, out_feats)
    assert aux["embedding"].shape == (N, hidden)
    assert aux["soft_label"].shape == (N, out_feats)
    assert aux["hard_label"].shape == (N,)
    assert bool(jnp.all(jnp.isfinite(logits)))
    assert bool(jnp.all(jnp.abs(jnp.sum(aux["soft_label"], axis=1) - 1.0) < 1e-5))
    print("KERNEL_OK")
</pallas_src>

<mosaic_0001>
module attributes {stable_mosaic.version = 11 : i64} {
  func.func @_proj_kernel(%arg0: i32, %arg1: memref<128x128xf32, #tpu.memory_space<vmem>>, %arg2: memref<128x128xf32, #tpu.memory_space<vmem>>, %arg3: memref<1x128xf32, #tpu.memory_space<vmem>>, %arg4: memref<128x128xf32, #tpu.memory_space<vmem>>) attributes {dimension_semantics = [#tpu.dimension_semantics<parallel>], iteration_bounds = array<i64: 1>, scalar_prefetch = 0 : i64, scratch_operands = 0 : i64, tpu.core_type = #tpu.core_type<tc>, window_params = [{transform_indices = @transform_0, window_bounds = array<i64: 128, 128>}, {pipeline_mode = #tpu.pipeline_mode<synchronous>, transform_indices = @transform_1, window_bounds = array<i64: 128, 128>}, {pipeline_mode = #tpu.pipeline_mode<synchronous>, transform_indices = @transform_2, window_bounds = array<i64: 1, 128>}, {transform_indices = @transform_3, window_bounds = array<i64: 128, 128>}]} {
    %c0 = arith.constant 0 : index
    %c0_0 = arith.constant 0 : index
    %0 = vector.load %arg1[%c0, %c0_0] : memref<128x128xf32, #tpu.memory_space<vmem>>, vector<128x128xf32>
    %c0_1 = arith.constant 0 : index
    %c0_2 = arith.constant 0 : index
    %1 = vector.load %arg2[%c0_1, %c0_2] : memref<128x128xf32, #tpu.memory_space<vmem>>, vector<128x128xf32>
    %cst = arith.constant dense<0.000000e+00> : vector<128x128xf32>
    %2 = tpu.matmul %0, %1, %cst {dimension_numbers = #tpu.dot_dimension_numbers<[1], [0], [0], [1], [0, 0, 1, 1], [], []>} : vector<128x128xf32>, vector<128x128xf32>, vector<128x128xf32> -> vector<128x128xf32>
    %c0_3 = arith.constant 0 : index
    %c0_4 = arith.constant 0 : index
    %3 = vector.load %arg3[%c0_3, %c0_4] : memref<1x128xf32, #tpu.memory_space<vmem>>, vector<1x128xf32>
    %4 = vector.broadcast %3 : vector<1x128xf32> to vector<128x128xf32>
    %5 = arith.addf %2, %4 : vector<128x128xf32>
    %c0_5 = arith.constant 0 : index
    %c0_6 = arith.constant 0 : index
    %6 = vector.load %arg4[%c0_5, %c0_6] : memref<128x128xf32, #tpu.memory_space<vmem>>, vector<128x128xf32>
    tpu.vector_store %arg4[%c0_5, %c0_6], %5 {strides = array<i32>} : memref<128x128xf32, #tpu.memory_space<vmem>>, vector<128x128xf32>,
    return
  }
  func.func @transform_0(%arg0: i32) -> (i32, i32) {
    %c0_i32 = arith.constant 0 : i32
    %c0_i32_0 = arith.constant 0 : i32
    return %arg0, %c0_i32 : i32, i32
  }
  func.func @transform_1(%arg0: i32) -> (i32, i32) {
    %c0_i32 = arith.constant 0 : i32
    %c0_i32_0 = arith.constant 0 : i32
    %c0_i32_1 = arith.constant 0 : i32
    return %c0_i32, %c0_i32_0 : i32, i32
  }
  func.func @transform_2(%arg0: i32) -> (i32, i32) {
    %c0_i32 = arith.constant 0 : i32
    %c0_i32_0 = arith.constant 0 : i32
    %c0_i32_1 = arith.constant 0 : i32
    return %c0_i32, %c0_i32_0 : i32, i32
  }
  func.func @transform_3(%arg0: i32) -> (i32, i32) {
    %c0_i32 = arith.constant 0 : i32
    %c0_i32_0 = arith.constant 0 : i32
    return %arg0, %c0_i32 : i32, i32
  }
}

</mosaic_0001>

<llo_original>
// kernel: tpu_custom_call.1
$region0: #{tpu_custom_call.1}
  #allocation0 [shape = 'u32[]', space=smem, size = 0x4, offset = 0x4, fixed_abs, tag = 'smem constant byte address 0x4 - core index']
  #allocation1 [shape = 'u32[72,128]{1,0:T(1,128)}', space=vmem, size = 0x9000, scoped, tag = 'internal scratch']
  %s0 = inlined_call_operand.hbm [shape: f32[128,128], index: 0, kind: input, shape index: {}]
  %s1 = inlined_call_operand.hbm [shape: f32[128,128], index: 1, kind: input, shape index: {}]
  %s2 = inlined_call_operand.vmem [shape: f32[1,128], index: 2, kind: input, shape index: {}]
  %s3 = inlined_call_operand.hbm [shape: f32[128,128], index: 3, kind: output, shape index: {}]
  %s4 = sld [smem:[#allocation0]]
  $region30: #{tpu_custom_call.1} parent=0
    _
  %s6 = ssub.s32 1, %s4
  %s7 = scalar_select 0, %s6, %s4
  $region1: #{tpu_custom_call.1} parent=0
    #allocation2 [shape = 'u8[65536]{0}', space=vmem, size = 0x10000, scoped, tag = 'input window, operand 0, single buffered']
    #allocation3 [shape = 's32[1]{0}', space=sflag, size = 0x4, scoped, tag = 'scoped memory for tpu_custom_call.1']
    #allocation4 [shape = 's32[1]{0}', space=sflag, size = 0x4, scoped, tag = 'scoped memory for tpu_custom_call.1']
    #allocation5 [shape = 'u8[65536]{0}', space=vmem, size = 0x10000, scoped, tag = 'input window, operand 1, single buffered']
    #allocation6 [shape = 's32[1]{0}', space=sflag, size = 0x4, scoped, tag = 'scoped memory for tpu_custom_call.1']
    #allocation7 [shape = 'u8[65536]{0}', space=vmem, size = 0x10000, scoped, tag = 'output window, operand 0, single buffered']
    %8 = vsyncpa [#allocation3], 0
    %9 = vsyncpa [#allocation6], 0
    %10 = vsyncpa [#allocation4], 0
    // Predicated region
    $region2: #{tpu_custom_call.1} parent=1 // pred_check
      _
    $region3: #{tpu_custom_call.1} parent=1 // pred_check_branch
      %12 = sbr.rel (0) target = $region5
    $region4: #{tpu_custom_call.1} parent=1 // pred_region
      %14 = vsyncadd [#allocation3], 0
      %s15 = sshll.u32 %s0, 4
      %s16 = int_to_ptr.hbm [resolvable:$true] %s15
      %s17 = sshll.u32 [#allocation2], 4
      %s18 = int_to_ptr.vmem [resolvable:$true] %s17
      %23 = dma.hbm_to_vmem [thread:$0]  %s16, 2048, %s18, [#allocation3], 128, 128, 8
    $region5: #{tpu_custom_call.1} parent=1 // pred_fallthru
      _
    // Predicated region
    $region6: #{tpu_custom_call.1} parent=1 // pred_check
      _
    $region7: #{tpu_custom_call.1} parent=1 // pred_check_branch
      %25 = sbr.rel (0) target = $region9
    $region8: #{tpu_custom_call.1} parent=1 // pred_region
      %27 = vsyncadd [#allocation6], 0
      %s28 = sshll.u32 %s1, 4
      %s29 = int_to_ptr.hbm [resolvable:$true] %s28
      %s30 = sshll.u32 [#allocation5], 4
      %s31 = int_to_ptr.vmem [resolvable:$true] %s30
      %36 = dma.hbm_to_vmem [thread:$0]  %s29, 2048, %s31, [#allocation6], 128, 128, 8
    $region9: #{tpu_custom_call.1} parent=1 // pred_fallthru
      _
    // Predicated region
    $region10: #{tpu_custom_call.1} parent=1 // pred_check
      _
    $region11: #{tpu_custom_call.1} parent=1 // pred_check_branch
      %38 = sbr.rel (0) target = $region13
    $region12: #{tpu_custom_call.1} parent=1 // pred_region
      _
    $region13: #{tpu_custom_call.1} parent=1 // pred_fallthru
      _
    // Predicated region
    $region14: #{tpu_custom_call.1} parent=1 // pred_check
      _
    $region15: #{tpu_custom_call.1} parent=1 // pred_check_branch
      %40 = sbr.rel (0) target = $region17
    $region16: #{tpu_custom_call.1} parent=1 // pred_region
      %42 = dma.done [#allocation3], 2048
    $region17: #{tpu_custom_call.1} parent=1 // pred_fallthru
      _
    // Predicated region
    $region18: #{tpu_custom_call.1} parent=1 // pred_check
      _
    $region19: #{tpu_custom_call.1} parent=1 // pred_check_branch
      %44 = sbr.rel (0) target = $region21
    $region20: #{tpu_custom_call.1} parent=1 // pred_region
      %46 = dma.done [#allocation6], 2048
    $region21: #{tpu_custom_call.1} parent=1 // pred_fallthru
      _
    %v47 = vld [vmem:[#allocation2] sm:$0xff]
    %v48 = vld [vmem:[#allocation2 + $0x8] sm:$0xff]
    %v49 = vld [vmem:[#allocation2 + $0x10] sm:$0xff]
    %v50 = vld [vmem:[#allocation2 + $0x18] sm:$0xff]
    %v51 = vld [vmem:[#allocation2 + $0x20] sm:$0xff]
    %v52 = vld [vmem:[#allocation2 + $0x28] sm:$0xff]
    %v53 = vld [vmem:[#allocation2 + $0x30] sm:$0xff]
    %v54 = vld [vmem:[#allocation2 + $0x38] sm:$0xff]
    %v55 = vld [vmem:[#allocation2 + $0x40] sm:$0xff]
    %v56 = vld [vmem:[#allocation2 + $0x48] sm:$0xff]
    %v57 = vld [vmem:[#allocation2 + $0x50] sm:$0xff]
    %v58 = vld [vmem:[#allocation2 + $0x58] sm:$0xff]
    %v59 = vld [vmem:[#allocation2 + $0x60] sm:$0xff]
    %v60 = vld [vmem:[#allocation2 + $0x68] sm:$0xff]
    %v61 = vld [vmem:[#allocation2 + $0x70] sm:$0xff]
    %v62 = vld [vmem:[#allocation2 + $0x78] sm:$0xff]
    %v63 = vld [vmem:[#allocation5] sm:$0xff]
    %v64 = vld [vmem:[#allocation5 + $0x8] sm:$0xff]
    %v65 = vld [vmem:[#allocation5 + $0x10] sm:$0xff]
    %v66 = vld [vmem:[#allocation5 + $0x18] sm:$0xff]
    %v67 = vld [vmem:[#allocation5 + $0x20] sm:$0xff]
    %v68 = vld [vmem:[#allocation5 + $0x28] sm:$0xff]
    %v69 = vld [vmem:[#allocation5 + $0x30] sm:$0xff]
    %v70 = vld [vmem:[#allocation5 + $0x38] sm:$0xff]
    %v71 = vld [vmem:[#allocation5 + $0x40] sm:$0xff]
    %v72 = vld [vmem:[#allocation5 + $0x48] sm:$0xff]
    %v73 = vld [vmem:[#allocation5 + $0x50] sm:$0xff]
    %v74 = vld [vmem:[#allocation5 + $0x58] sm:$0xff]
    %v75 = vld [vmem:[#allocation5 + $0x60] sm:$0xff]
    %v76 = vld [vmem:[#allocation5 + $0x68] sm:$0xff]
    %v77 = vld [vmem:[#allocation5 + $0x70] sm:$0xff]
    %v78 = vld [vmem:[#allocation5 + $0x78] sm:$0xff]
    %v79 = vld [vmem:[%s2] sm:$0x1]
    %v81 = vperm.slane %v79, 0
    %83 = vmatpush.msra.mxu0 %v78
    %84 = vmatpush.msra.mxu0 %v77
    %85 = vmatpush.msra.mxu0 %v76
    %86 = vmatpush.msra.mxu0 %v75
    %87 = vmatpush.msra.mxu0 %v74
    %88 = vmatpush.msra.mxu0 %v73
    %89 = vmatpush.msra.mxu0 %v72
    %90 = vmatpush.msra.mxu0 %v71
    %91 = vmatpush.msra.mxu0 %v70
    %92 = vmatpush.msra.mxu0 %v69
    %93 = vmatpush.msra.mxu0 %v68
    %94 = vmatpush.msra.mxu0 %v67
    %95 = vmatpush.msra.mxu0 %v66
    %96 = vmatpush.msra.mxu0 %v65
    %97 = vmatpush.msra.mxu0 %v64
    %98 = vmatpush.msra.mxu0 %v63
    %99 = vmatmul.f32.gmra.mxu0 %v47
    %v100 = vpop.f32.mrf.mxu0
    %v101 = vadd.f32 %v81, %v100
    %102 = vmatmul.f32.gmra.mxu0 %v48
    %v103 = vpop.f32.mrf.mxu0
    %v104 = vadd.f32 %v81, %v103
    %105 = vmatmul.f32.gmra.mxu0 %v49
    %v106 = vpop.f32.mrf.mxu0
    %v107 = vadd.f32 %v81, %v106
    %108 = vmatmul.f32.gmra.mxu0 %v50
    %v109 = vpop.f32.mrf.mxu0
    %v110 = vadd.f32 %v81, %v109
    %111 = vmatmul.f32.gmra.mxu0 %v51
    %v112 = vpop.f32.mrf.mxu0
    %v113 = vadd.f32 %v81, %v112
    %114 = vmatmul.f32.gmra.mxu0 %v52
    %v115 = vpop.f32.mrf.mxu0
    %v116 = vadd.f32 %v81, %v115
    %117 = vmatmul.f32.gmra.mxu0 %v53
    %v118 = vpop.f32.mrf.mxu0
    %v119 = vadd.f32 %v81, %v118
    %120 = vmatmul.f32.gmra.mxu0 %v54
    %v121 = vpop.f32.mrf.mxu0
    %v122 = vadd.f32 %v81, %v121
    %123 = vmatmul.f32.gmra.mxu0 %v55
    %v124 = vpop.f32.mrf.mxu0
    %v125 = vadd.f32 %v81, %v124
    %126 = vmatmul.f32.gmra.mxu0 %v56
    %v127 = vpop.f32.mrf.mxu0
    %v128 = vadd.f32 %v81, %v127
    %129 = vmatmul.f32.gmra.mxu0 %v57
    %v130 = vpop.f32.mrf.mxu0
    %v131 = vadd.f32 %v81, %v130
    %132 = vmatmul.f32.gmra.mxu0 %v58
    %v133 = vpop.f32.mrf.mxu0
    %v134 = vadd.f32 %v81, %v133
    %135 = vmatmul.f32.gmra.mxu0 %v59
    %v136 = vpop.f32.mrf.mxu0
    %v137 = vadd.f32 %v81, %v136
    %138 = vmatmul.f32.gmra.mxu0 %v60
    %v139 = vpop.f32.mrf.mxu0
    %v140 = vadd.f32 %v81, %v139
    %141 = vmatmul.f32.gmra.mxu0 %v61
    %v142 = vpop.f32.mrf.mxu0
    %v143 = vadd.f32 %v81, %v142
    %144 = vmatmul.f32.gmra.mxu0 %v62
    %v145 = vpop.f32.mrf.mxu0
    %v146 = vadd.f32 %v81, %v145
    %147 = vdwg.mxu0
    %148 = vst [vmem:[#allocation7] sm:$0xff] %v101
    %149 = vst [vmem:[#allocation7 + $0x8] sm:$0xff] %v104
    %150 = vst [vmem:[#allocation7 + $0x10] sm:$0xff] %v107
    %151 = vst [vmem:[#allocation7 + $0x18] sm:$0xff] %v110
    %152 = vst [vmem:[#allocation7 + $0x20] sm:$0xff] %v113
    %153 = vst [vmem:[#allocation7 + $0x28] sm:$0xff] %v116
    %154 = vst [vmem:[#allocation7 + $0x30] sm:$0xff] %v119
    %155 = vst [vmem:[#allocation7 + $0x38] sm:$0xff] %v122
    %156 = vst [vmem:[#allocation7 + $0x40] sm:$0xff] %v125
    %157 = vst [vmem:[#allocation7 + $0x48] sm:$0xff] %v128
    %158 = vst [vmem:[#allocation7 + $0x50] sm:$0xff] %v131
    %159 = vst [vmem:[#allocation7 + $0x58] sm:$0xff] %v134
    %160 = vst [vmem:[#allocation7 + $0x60] sm:$0xff] %v137
    %161 = vst [vmem:[#allocation7 + $0x68] sm:$0xff] %v140
    %162 = vst [vmem:[#allocation7 + $0x70] sm:$0xff] %v143
    %163 = vst [vmem:[#allocation7 + $0x78] sm:$0xff] %v146
    // Predicated region
    $region22: #{tpu_custom_call.1} parent=1 // pred_check
      _
    $region23: #{tpu_custom_call.1} parent=1 // pred_check_branch
      %165 = sbr.rel (0) target = $region25
    $region24: #{tpu_custom_call.1} parent=1 // pred_region
      %167 = vsyncadd [#allocation4], 0
      %s168 = sshll.u32 [#allocation7], 4
      %s169 = int_to_ptr.vmem [resolvable:$true] %s168
      %s170 = sshll.u32 %s3, 4
      %s171 = int_to_ptr.hbm [resolvable:$true] %s170
      %176 = dma.vmem_to_hbm [thread:$0]  %s169, 2048, %s171, [#allocation4], 128, 128, 8
    $region25: #{tpu_custom_call.1} parent=1 // pred_fallthru
      _
    // Predicated region
    $region26: #{tpu_custom_call.1} parent=1 // pred_check
      _
    $region27: #{tpu_custom_call.1} parent=1 // pred_check_branch
      %178 = sbr.rel (0) target = $region29
    $region28: #{tpu_custom_call.1} parent=1 // pred_region
      %180 = dma.done [#allocation4], 2048
    $region29: #{tpu_custom_call.1} parent=1 // pred_fallthru
      _
    %181 = vsyncpa [#allocation3], 1
    %182 = vsyncpa [#allocation6], 1
    %183 = vsyncpa [#allocation4], 1

</llo_original>
